<compile_context>
chip_gen: v5e
topology: v5e:2x2
jax: 0.10.0
libtpu: 0.0.40
codegen_flags: <defaults>
</compile_context>

<pallas_src>
import jax
import jax.numpy as jnp
from jax import lax
from jax.experimental import pallas as pl
from jax.experimental.pallas import tpu as pltpu  # noqa: F401  (TPU backend)

BN_EPS = 1e-5


def _full_spec(shape):
    zeros = (0,) * len(shape)
    return pl.BlockSpec(shape, lambda *_: zeros)


def make_frame_linear_kernel(n_layers):
    """Build the fused kernel for a given (static) number of FC layers.

    Ref layout:  x, then per hidden layer (w, b, gamma, beta), for the final layer
    just (w, b), then out.  All weights are stored as [in, out] (PyTorch W^T), all
    per-channel vectors as [1, C] so they broadcast over the batch rows.
    """

    def kernel(*refs):
        x_ref, out_ref = refs[0], refs[-1]
        p = refs[1:-1]

        h = x_ref[...]
        idx = 0
        for i in range(n_layers):                      # static unroll over layers
            last = i == n_layers - 1
            w = p[idx][...]
            b = p[idx + 1][...]
            z = jnp.dot(h, w, preferred_element_type=jnp.float32) + b
            if last:
                # Final FCLayer: Identity activation, no BatchNorm.
                out_ref[...] = z.astype(out_ref.dtype)
            else:
                h = jnp.maximum(z, 0.0)                # ReLU
                gamma = p[idx + 2][...]
                beta = p[idx + 3][...]
                # One-pass training-mode BatchNorm1d over the batch (rows).
                n = h.shape[0]
                s = jnp.sum(h, axis=0, keepdims=True)
                ss = jnp.sum(h * h, axis=0, keepdims=True)
                mean = s / n
                var = jnp.maximum(ss / n - mean * mean, 0.0)   # clamp >= 0
                scale = gamma * lax.rsqrt(var + BN_EPS)        # [1, C]
                shift = beta - mean * scale                    # [1, C]
                h = h * scale + shift                          # fused scale/shift
                idx += 4

    return kernel


def frame_linear_net_forward(x, params):
    """FrameLinearNet forward. x: [N, input_size] float32. Returns [N, output_size]."""
    N = x.shape[0]
    n_layers = len(params)

    flat = [x]
    in_specs = [_full_spec(x.shape)]
    for i, layer in enumerate(params):
        if i < n_layers - 1:
            w, b, gamma, beta = layer
            arrs = (w, b.reshape(1, -1), gamma.reshape(1, -1), beta.reshape(1, -1))
        else:
            w, b = layer
            arrs = (w, b.reshape(1, -1))
        for a in arrs:
            flat.append(a)
            in_specs.append(_full_spec(a.shape))

    out_size = params[-1][0].shape[1]
    return pl.pallas_call(
        make_frame_linear_kernel(n_layers),
        out_shape=jax.ShapeDtypeStruct((N, out_size), jnp.float32),
        in_specs=in_specs,
        out_specs=_full_spec((N, out_size)),
    )(*flat)


# ----------------------- pure-JAX reference (for checking) -----------------------
def _reference_forward(x, params):
    h = x
    n_layers = len(params)
    for i, layer in enumerate(params):
        if i < n_layers - 1:
            w, b, gamma, beta = layer
            h = jnp.maximum(h @ w + b, 0.0)
            mean = jnp.mean(h, axis=0, keepdims=True)
            var = jnp.mean((h - mean) ** 2, axis=0, keepdims=True)
            h = (h - mean) * lax.rsqrt(var + BN_EPS) * gamma + beta
        else:
            w, b = layer
            h = h @ w + b
    return h


def init_params(key, input_size, hidden_size, output_size, n_layers):
    """Deterministic synthetic parameters (shapes match the PyTorch module).

    Weights are stored as [in_features, out_features] (the transpose of nn.Linear's
    weight); biases as [out_features]; BN gamma=1, beta=0 (PyTorch init).
    """
    params = []
    sizes_in = [input_size] + [hidden_size] * (n_layers - 1)
    sizes_out = [hidden_size] * (n_layers - 1) + [output_size]
    for i, (ci, co) in enumerate(zip(sizes_in, sizes_out)):
        key, kw, kb = jax.random.split(key, 3)
        w = jax.random.normal(kw, (ci, co), jnp.float32) * 0.1
        b = jax.random.normal(kb, (co,), jnp.float32) * 0.1
        if i < n_layers - 1:
            gamma = jnp.ones((co,), jnp.float32)
            beta = jnp.zeros((co,), jnp.float32)
            params.append((w, b, gamma, beta))
        else:
            params.append((w, b))
    return params


if __name__ == "__main__":
    key = jax.random.PRNGKey(0)
    key, kx = jax.random.split(key)

    # Small shapes implied by the module defaults:
    #   input_size=32, hidden_size=32, output_size=8, n_layers=3; batch=64.
    N, IN_SIZE, HID, OUT_SIZE, NLAYERS = 64, 32, 32, 8, 3

    x = jax.random.normal(kx, (N, IN_SIZE), jnp.float32)
    params = init_params(key, IN_SIZE, HID, OUT_SIZE, NLAYERS)

    out = frame_linear_net_forward(x, params)
    out = jax.block_until_ready(out)
    assert out.shape == (N, OUT_SIZE), out.shape

    ref = _reference_forward(x, params)
    err = float(jnp.max(jnp.abs(out - ref)))
    assert err < 1e-3, f"mismatch vs reference: {err}"

    print("KERNEL_OK")
</pallas_src>

<mosaic_0001>
module attributes {stable_mosaic.version = 11 : i64} {
  func.func @kernel(%arg0: memref<64x32xf32, #tpu.memory_space<vmem>>, %arg1: memref<32x32xf32, #tpu.memory_space<vmem>>, %arg2: memref<1x32xf32, #tpu.memory_space<vmem>>, %arg3: memref<1x32xf32, #tpu.memory_space<vmem>>, %arg4: memref<1x32xf32, #tpu.memory_space<vmem>>, %arg5: memref<32x32xf32, #tpu.memory_space<vmem>>, %arg6: memref<1x32xf32, #tpu.memory_space<vmem>>, %arg7: memref<1x32xf32, #tpu.memory_space<vmem>>, %arg8: memref<1x32xf32, #tpu.memory_space<vmem>>, %arg9: memref<32x8xf32, #tpu.memory_space<vmem>>, %arg10: memref<1x8xf32, #tpu.memory_space<vmem>>, %arg11: memref<64x8xf32, #tpu.memory_space<vmem>>) attributes {dimension_semantics = [], scalar_prefetch = 0 : i64, scratch_operands = 0 : i64, tpu.core_type = #tpu.core_type<tc>} {
    %c0 = arith.constant 0 : index
    %c0_0 = arith.constant 0 : index
    %0 = vector.load %arg0[%c0, %c0_0] : memref<64x32xf32, #tpu.memory_space<vmem>>, vector<64x32xf32>
    %c0_1 = arith.constant 0 : index
    %c0_2 = arith.constant 0 : index
    %1 = vector.load %arg1[%c0_1, %c0_2] : memref<32x32xf32, #tpu.memory_space<vmem>>, vector<32x32xf32>
    %c0_3 = arith.constant 0 : index
    %c0_4 = arith.constant 0 : index
    %2 = vector.load %arg2[%c0_3, %c0_4] : memref<1x32xf32, #tpu.memory_space<vmem>>, vector<1x32xf32>
    %cst = arith.constant dense<0.000000e+00> : vector<64x32xf32>
    %3 = tpu.matmul %0, %1, %cst {dimension_numbers = #tpu.dot_dimension_numbers<[1], [0], [0], [1], [0, 0, 1, 1], [], []>} : vector<64x32xf32>, vector<32x32xf32>, vector<64x32xf32> -> vector<64x32xf32>
    %4 = vector.broadcast %2 : vector<1x32xf32> to vector<64x32xf32>
    %5 = arith.addf %3, %4 : vector<64x32xf32>
    %cst_5 = arith.constant 0.000000e+00 : f32
    %6 = vector.broadcast %cst_5 : f32 to vector<64x32xf32>
    %7 = arith.maximumf %5, %6 : vector<64x32xf32>
    %c0_6 = arith.constant 0 : index
    %c0_7 = arith.constant 0 : index
    %8 = vector.load %arg3[%c0_6, %c0_7] : memref<1x32xf32, #tpu.memory_space<vmem>>, vector<1x32xf32>
    %c0_8 = arith.constant 0 : index
    %c0_9 = arith.constant 0 : index
    %9 = vector.load %arg4[%c0_8, %c0_9] : memref<1x32xf32, #tpu.memory_space<vmem>>, vector<1x32xf32>
    %cst_10 = arith.constant dense<0.000000e+00> : vector<32xf32>
    %10 = vector.multi_reduction <add>, %7, %cst_10 [0] : vector<64x32xf32> to vector<32xf32>
    %11 = vector.shape_cast %10 : vector<32xf32> to vector<1x32xf32>
    %12 = arith.mulf %7, %7 : vector<64x32xf32>
    %cst_11 = arith.constant dense<0.000000e+00> : vector<32xf32>
    %13 = vector.multi_reduction <add>, %12, %cst_11 [0] : vector<64x32xf32> to vector<32xf32>
    %14 = vector.shape_cast %13 : vector<32xf32> to vector<1x32xf32>
    %cst_12 = arith.constant 6.400000e+01 : f32
    %15 = vector.broadcast %cst_12 : f32 to vector<1x32xf32>
    %16 = arith.divf %11, %15 : vector<1x32xf32>
    %cst_13 = arith.constant 6.400000e+01 : f32
    %17 = vector.broadcast %cst_13 : f32 to vector<1x32xf32>
    %18 = arith.divf %14, %17 : vector<1x32xf32>
    %19 = arith.mulf %16, %16 : vector<1x32xf32>
    %20 = arith.subf %18, %19 : vector<1x32xf32>
    %cst_14 = arith.constant 0.000000e+00 : f32
    %21 = vector.broadcast %cst_14 : f32 to vector<1x32xf32>
    %22 = arith.maximumf %20, %21 : vector<1x32xf32>
    %cst_15 = arith.constant 9.99999974E-6 : f32
    %23 = vector.broadcast %cst_15 : f32 to vector<1x32xf32>
    %24 = arith.addf %22, %23 : vector<1x32xf32>
    %25 = math.rsqrt %24 : vector<1x32xf32>
    %26 = arith.mulf %8, %25 : vector<1x32xf32>
    %27 = arith.mulf %16, %26 : vector<1x32xf32>
    %28 = arith.subf %9, %27 : vector<1x32xf32>
    %29 = vector.broadcast %26 : vector<1x32xf32> to vector<64x32xf32>
    %30 = arith.mulf %7, %29 : vector<64x32xf32>
    %31 = vector.broadcast %28 : vector<1x32xf32> to vector<64x32xf32>
    %32 = arith.addf %30, %31 : vector<64x32xf32>
    %c0_16 = arith.constant 0 : index
    %c0_17 = arith.constant 0 : index
    %33 = vector.load %arg5[%c0_16, %c0_17] : memref<32x32xf32, #tpu.memory_space<vmem>>, vector<32x32xf32>
    %c0_18 = arith.constant 0 : index
    %c0_19 = arith.constant 0 : index
    %34 = vector.load %arg6[%c0_18, %c0_19] : memref<1x32xf32, #tpu.memory_space<vmem>>, vector<1x32xf32>
    %cst_20 = arith.constant dense<0.000000e+00> : vector<64x32xf32>
    %35 = tpu.matmul %32, %33, %cst_20 {dimension_numbers = #tpu.dot_dimension_numbers<[1], [0], [0], [1], [0, 0, 1, 1], [], []>} : vector<64x32xf32>, vector<32x32xf32>, vector<64x32xf32> -> vector<64x32xf32>
    %36 = vector.broadcast %34 : vector<1x32xf32> to vector<64x32xf32>
    %37 = arith.addf %35, %36 : vector<64x32xf32>
    %cst_21 = arith.constant 0.000000e+00 : f32
    %38 = vector.broadcast %cst_21 : f32 to vector<64x32xf32>
    %39 = arith.maximumf %37, %38 : vector<64x32xf32>
    %c0_22 = arith.constant 0 : index
    %c0_23 = arith.constant 0 : index
    %40 = vector.load %arg7[%c0_22, %c0_23] : memref<1x32xf32, #tpu.memory_space<vmem>>, vector<1x32xf32>
    %c0_24 = arith.constant 0 : index
    %c0_25 = arith.constant 0 : index
    %41 = vector.load %arg8[%c0_24, %c0_25] : memref<1x32xf32, #tpu.memory_space<vmem>>, vector<1x32xf32>
    %cst_26 = arith.constant dense<0.000000e+00> : vector<32xf32>
    %42 = vector.multi_reduction <add>, %39, %cst_26 [0] : vector<64x32xf32> to vector<32xf32>
    %43 = vector.shape_cast %42 : vector<32xf32> to vector<1x32xf32>
    %44 = arith.mulf %39, %39 : vector<64x32xf32>
    %cst_27 = arith.constant dense<0.000000e+00> : vector<32xf32>
    %45 = vector.multi_reduction <add>, %44, %cst_27 [0] : vector<64x32xf32> to vector<32xf32>
    %46 = vector.shape_cast %45 : vector<32xf32> to vector<1x32xf32>
    %cst_28 = arith.constant 6.400000e+01 : f32
    %47 = vector.broadcast %cst_28 : f32 to vector<1x32xf32>
    %48 = arith.divf %43, %47 : vector<1x32xf32>
    %cst_29 = arith.constant 6.400000e+01 : f32
    %49 = vector.broadcast %cst_29 : f32 to vector<1x32xf32>
    %50 = arith.divf %46, %49 : vector<1x32xf32>
    %51 = arith.mulf %48, %48 : vector<1x32xf32>
    %52 = arith.subf %50, %51 : vector<1x32xf32>
    %cst_30 = arith.constant 0.000000e+00 : f32
    %53 = vector.broadcast %cst_30 : f32 to vector<1x32xf32>
    %54 = arith.maximumf %52, %53 : vector<1x32xf32>
    %cst_31 = arith.constant 9.99999974E-6 : f32
    %55 = vector.broadcast %cst_31 : f32 to vector<1x32xf32>
    %56 = arith.addf %54, %55 : vector<1x32xf32>
    %57 = math.rsqrt %56 : vector<1x32xf32>
    %58 = arith.mulf %40, %57 : vector<1x32xf32>
    %59 = arith.mulf %48, %58 : vector<1x32xf32>
    %60 = arith.subf %41, %59 : vector<1x32xf32>
    %61 = vector.broadcast %58 : vector<1x32xf32> to vector<64x32xf32>
    %62 = arith.mulf %39, %61 : vector<64x32xf32>
    %63 = vector.broadcast %60 : vector<1x32xf32> to vector<64x32xf32>
    %64 = arith.addf %62, %63 : vector<64x32xf32>
    %c0_32 = arith.constant 0 : index
    %c0_33 = arith.constant 0 : index
    %65 = vector.load %arg9[%c0_32, %c0_33] : memref<32x8xf32, #tpu.memory_space<vmem>>, vector<32x8xf32>
    %c0_34 = arith.constant 0 : index
    %c0_35 = arith.constant 0 : index
    %66 = vector.load %arg10[%c0_34, %c0_35] : memref<1x8xf32, #tpu.memory_space<vmem>>, vector<1x8xf32>
    %cst_36 = arith.constant dense<0.000000e+00> : vector<64x8xf32>
    %67 = tpu.matmul %64, %65, %cst_36 {dimension_numbers = #tpu.dot_dimension_numbers<[1], [0], [0], [1], [0, 0, 1, 1], [], []>} : vector<64x32xf32>, vector<32x8xf32>, vector<64x8xf32> -> vector<64x8xf32>
    %68 = vector.broadcast %66 : vector<1x8xf32> to vector<64x8xf32>
    %69 = arith.addf %67, %68 : vector<64x8xf32>
    %c0_37 = arith.constant 0 : index
    %c0_38 = arith.constant 0 : index
    %70 = vector.load %arg11[%c0_37, %c0_38] : memref<64x8xf32, #tpu.memory_space<vmem>>, vector<64x8xf32>
    tpu.vector_store %arg11[%c0_37, %c0_38], %69 {strides = array<i32>} : memref<64x8xf32, #tpu.memory_space<vmem>>, vector<64x8xf32>,
    return
  }
}

</mosaic_0001>

<llo_original>
// kernel: tpu_custom_call.1
$region0: #{tpu_custom_call.1}
  #allocation0 [shape = 'u32[]', space=smem, size = 0x4, offset = 0x4, fixed_abs, tag = 'smem constant byte address 0x4 - core index']
  #allocation1 [shape = 'u32[72,128]{1,0:T(1,128)}', space=vmem, size = 0x9000, scoped, tag = 'internal scratch']
  %s0 = inlined_call_operand.vmem [shape: f32[64,32], index: 0, kind: input, shape index: {}]
  %s1 = inlined_call_operand.vmem [shape: f32[32,32], index: 1, kind: input, shape index: {}]
  %s2 = inlined_call_operand.vmem [shape: f32[1,32], index: 2, kind: input, shape index: {}]
  %s3 = inlined_call_operand.vmem [shape: f32[1,32], index: 3, kind: input, shape index: {}]
  %s4 = inlined_call_operand.vmem [shape: f32[1,32], index: 4, kind: input, shape index: {}]
  %s5 = inlined_call_operand.vmem [shape: f32[32,32], index: 5, kind: input, shape index: {}]
  %s6 = inlined_call_operand.vmem [shape: f32[1,32], index: 6, kind: input, shape index: {}]
  %s7 = inlined_call_operand.vmem [shape: f32[1,32], index: 7, kind: input, shape index: {}]
  %s8 = inlined_call_operand.vmem [shape: f32[1,32], index: 8, kind: input, shape index: {}]
  %s9 = inlined_call_operand.vmem [shape: f32[32,8], index: 9, kind: input, shape index: {}]
  %s10 = inlined_call_operand.vmem [shape: f32[1,8], index: 10, kind: input, shape index: {}]
  %s11 = inlined_call_operand.vmem [shape: f32[64,8], index: 11, kind: output, shape index: {}]
  %s12 = sld [smem:[#allocation0]]
  $region54: #{tpu_custom_call.1} parent=0
    _
  %s14 = ssub.s32 1, %s12
  %s15 = scalar_select 0, %s14, %s12
  // Predicated region
  $region2: #{tpu_custom_call.1} parent=0 // pred_check
    _
  $region3: #{tpu_custom_call.1} parent=0 // pred_check_branch
    %17 = sbr.rel (0) target = $region5
  $region4: #{tpu_custom_call.1} parent=0 // pred_region
    _
  $region5: #{tpu_custom_call.1} parent=0 // pred_fallthru
    _
  // Predicated region
  $region6: #{tpu_custom_call.1} parent=0 // pred_check
    _
  $region7: #{tpu_custom_call.1} parent=0 // pred_check_branch
    %19 = sbr.rel (0) target = $region9
  $region8: #{tpu_custom_call.1} parent=0 // pred_region
    _
  $region9: #{tpu_custom_call.1} parent=0 // pred_fallthru
    _
  // Predicated region
  $region10: #{tpu_custom_call.1} parent=0 // pred_check
    _
  $region11: #{tpu_custom_call.1} parent=0 // pred_check_branch
    %21 = sbr.rel (0) target = $region13
  $region12: #{tpu_custom_call.1} parent=0 // pred_region
    _
  $region13: #{tpu_custom_call.1} parent=0 // pred_fallthru
    _
  // Predicated region
  $region14: #{tpu_custom_call.1} parent=0 // pred_check
    _
  $region15: #{tpu_custom_call.1} parent=0 // pred_check_branch
    %23 = sbr.rel (0) target = $region17
  $region16: #{tpu_custom_call.1} parent=0 // pred_region
    _
  $region17: #{tpu_custom_call.1} parent=0 // pred_fallthru
    _
  // Predicated region
  $region18: #{tpu_custom_call.1} parent=0 // pred_check
    _
  $region19: #{tpu_custom_call.1} parent=0 // pred_check_branch
    %25 = sbr.rel (0) target = $region21
  $region20: #{tpu_custom_call.1} parent=0 // pred_region
    _
  $region21: #{tpu_custom_call.1} parent=0 // pred_fallthru
    _
  // Predicated region
  $region22: #{tpu_custom_call.1} parent=0 // pred_check
    _
  $region23: #{tpu_custom_call.1} parent=0 // pred_check_branch
    %27 = sbr.rel (0) target = $region25
  $region24: #{tpu_custom_call.1} parent=0 // pred_region
    _
  $region25: #{tpu_custom_call.1} parent=0 // pred_fallthru
    _
  // Predicated region
  $region26: #{tpu_custom_call.1} parent=0 // pred_check
    _
  $region27: #{tpu_custom_call.1} parent=0 // pred_check_branch
    %29 = sbr.rel (0) target = $region29
  $region28: #{tpu_custom_call.1} parent=0 // pred_region
    _
  $region29: #{tpu_custom_call.1} parent=0 // pred_fallthru
    _
  // Predicated region
  $region30: #{tpu_custom_call.1} parent=0 // pred_check
    _
  $region31: #{tpu_custom_call.1} parent=0 // pred_check_branch
    %31 = sbr.rel (0) target = $region33
  $region32: #{tpu_custom_call.1} parent=0 // pred_region
    _
  $region33: #{tpu_custom_call.1} parent=0 // pred_fallthru
    _
  // Predicated region
  $region34: #{tpu_custom_call.1} parent=0 // pred_check
    _
  $region35: #{tpu_custom_call.1} parent=0 // pred_check_branch
    %33 = sbr.rel (0) target = $region37
  $region36: #{tpu_custom_call.1} parent=0 // pred_region
    _
  $region37: #{tpu_custom_call.1} parent=0 // pred_fallthru
    _
  // Predicated region
  $region38: #{tpu_custom_call.1} parent=0 // pred_check
    _
  $region39: #{tpu_custom_call.1} parent=0 // pred_check_branch
    %35 = sbr.rel (0) target = $region41
  $region40: #{tpu_custom_call.1} parent=0 // pred_region
    _
  $region41: #{tpu_custom_call.1} parent=0 // pred_fallthru
    _
  // Predicated region
  $region42: #{tpu_custom_call.1} parent=0 // pred_check
    _
  $region43: #{tpu_custom_call.1} parent=0 // pred_check_branch
    %37 = sbr.rel (0) target = $region45
  $region44: #{tpu_custom_call.1} parent=0 // pred_region
    _
  $region45: #{tpu_custom_call.1} parent=0 // pred_fallthru
    _
  %v38 = vld [vmem:[%s0] sm:$0xff]
  %v39 = vld [vmem:[%s0 + $0x8] sm:$0xff]
  %v40 = vld [vmem:[%s0 + $0x10] sm:$0xff]
  %v41 = vld [vmem:[%s0 + $0x18] sm:$0xff]
  %v42 = vld [vmem:[%s0 + $0x20] sm:$0xff]
  %v43 = vld [vmem:[%s0 + $0x28] sm:$0xff]
  %v44 = vld [vmem:[%s0 + $0x30] sm:$0xff]
  %v45 = vld [vmem:[%s0 + $0x38] sm:$0xff]
  %v46 = vld [vmem:[%s1] sm:$0xff]
  %v47 = vld [vmem:[%s1 + $0x8] sm:$0xff]
  %v48 = vld [vmem:[%s1 + $0x10] sm:$0xff]
  %v49 = vld [vmem:[%s1 + $0x18] sm:$0xff]
  %v50 = vld [vmem:[%s2] sm:$0x1]
  %v52 = vperm.slane %v50, 0
  %vm54 = vcmask 261120
  %v56 = vsel %vm54, %v38, 0
  %v59 = vsel %vm54, %v39, 0
  %v62 = vsel %vm54, %v40, 0
  %v65 = vsel %vm54, %v41, 0
  %v68 = vsel %vm54, %v42, 0
  %v71 = vsel %vm54, %v43, 0
  %v74 = vsel %vm54, %v44, 0
  %v77 = vsel %vm54, %v45, 0
  %79 = vmatpush.msra.mxu0 0.0
  %80 = vmatpush.msra.mxu0 0.0
  %81 = vmatpush.msra.mxu0 0.0
  %82 = vmatpush.msra.mxu0 0.0
  %83 = vmatpush.msra.mxu0 0.0
  %84 = vmatpush.msra.mxu0 0.0
  %85 = vmatpush.msra.mxu0 0.0
  %86 = vmatpush.msra.mxu0 0.0
  %87 = vmatpush.msra.mxu0 0.0
  %88 = vmatpush.msra.mxu0 0.0
  %89 = vmatpush.msra.mxu0 0.0
  %90 = vmatpush.msra.mxu0 0.0
  %91 = vmatpush.msra.mxu0 %v49
  %92 = vmatpush.msra.mxu0 %v48
  %93 = vmatpush.msra.mxu0 %v47
  %94 = vmatpush.msra.mxu0 %v46
  %95 = vmatmul.f32.gmra.mxu0 %v56
  %v96 = vpop.f32.mrf.mxu0
  %v97 = vadd.f32 %v52, %v96
  %98 = vmatmul.f32.gmra.mxu0 %v59
  %v99 = vpop.f32.mrf.mxu0
  %v100 = vadd.f32 %v52, %v99
  %101 = vmatmul.f32.gmra.mxu0 %v62
  %v102 = vpop.f32.mrf.mxu0
  %v103 = vadd.f32 %v52, %v102
  %104 = vmatmul.f32.gmra.mxu0 %v65
  %v105 = vpop.f32.mrf.mxu0
  %v106 = vadd.f32 %v52, %v105
  %107 = vmatmul.f32.gmra.mxu0 %v68
  %v108 = vpop.f32.mrf.mxu0
  %v109 = vadd.f32 %v52, %v108
  %110 = vmatmul.f32.gmra.mxu0 %v71
  %v111 = vpop.f32.mrf.mxu0
  %v112 = vadd.f32 %v52, %v111
  %113 = vmatmul.f32.gmra.mxu0 %v74
  %v114 = vpop.f32.mrf.mxu0
  %v115 = vadd.f32 %v52, %v114
  %116 = vmatmul.f32.gmra.mxu0 %v77
  %v117 = vpop.f32.mrf.mxu0
  %v118 = vadd.f32 %v52, %v117
  %119 = vdwg.mxu0
  %v120 = vmax.f32 %v97, 0.0
  %v121 = vmax.f32 %v100, 0.0
  %v122 = vmax.f32 %v103, 0.0
  %v123 = vmax.f32 %v106, 0.0
  %v124 = vmax.f32 %v109, 0.0
  %v125 = vmax.f32 %v112, 0.0
  %v126 = vmax.f32 %v115, 0.0
  %v127 = vmax.f32 %v118, 0.0
  %v128 = vld [vmem:[%s3] sm:$0x1]
  %v129 = vld [vmem:[%s4] sm:$0x1]
  %v130 = vsel %vm54, %v120, 0.0
  %v131 = vsel %vm54, %v121, 0.0
  %v132 = vadd.f32 %v130, %v131
  %v133 = vsel %vm54, %v122, 0.0
  %v134 = vadd.f32 %v132, %v133
  %v135 = vsel %vm54, %v123, 0.0
  %v136 = vadd.f32 %v134, %v135
  %v137 = vsel %vm54, %v124, 0.0
  %v138 = vadd.f32 %v136, %v137
  %v139 = vsel %vm54, %v125, 0.0
  %v140 = vadd.f32 %v138, %v139
  %v141 = vsel %vm54, %v126, 0.0
  %v142 = vadd.f32 %v140, %v141
  %v143 = vsel %vm54, %v127, 0.0
  %v144 = vadd.f32 %v142, %v143
  %v145 = vrot.slane %v144, 4
  %v146 = vadd.f32 %v144, %v145
  %v147 = vrot.slane %v146, 2
  %v148 = vadd.f32 %v146, %v147
  %v149 = vrot.slane %v148, 1
  %v150 = vadd.f32 %v148, %v149
  %v151 = vmul.f32 %v120, %v120
  %v152 = vmul.f32 %v121, %v121
  %v153 = vmul.f32 %v122, %v122
  %v154 = vmul.f32 %v123, %v123
  %v155 = vmul.f32 %v124, %v124
  %v156 = vmul.f32 %v125, %v125
  %v157 = vmul.f32 %v126, %v126
  %v158 = vmul.f32 %v127, %v127
  %v159 = vsel %vm54, %v151, 0.0
  %v160 = vsel %vm54, %v152, 0.0
  %v161 = vadd.f32 %v159, %v160
  %v162 = vsel %vm54, %v153, 0.0
  %v163 = vadd.f32 %v161, %v162
  %v164 = vsel %vm54, %v154, 0.0
  %v165 = vadd.f32 %v163, %v164
  %v166 = vsel %vm54, %v155, 0.0
  %v167 = vadd.f32 %v165, %v166
  %v168 = vsel %vm54, %v156, 0.0
  %v169 = vadd.f32 %v167, %v168
  %v170 = vsel %vm54, %v157, 0.0
  %v171 = vadd.f32 %v169, %v170
  %v172 = vsel %vm54, %v158, 0.0
  %v173 = vadd.f32 %v171, %v172
  %v174 = vrot.slane %v173, 4
  %v175 = vadd.f32 %v173, %v174
  %v176 = vrot.slane %v175, 2
  %v177 = vadd.f32 %v175, %v176
  %v178 = vrot.slane %v177, 1
  %v179 = vadd.f32 %v177, %v178
  %v180 = vrcp.pop 64.0
  %v181 = vmul.f32 64.0, %v180
  %v182 = vsub.f32 1.0, %v181
  %v183 = vmul.f32 %v180, %v182
  %v184 = vadd.f32 %v180, %v183
  %vm185 = vweird.f32 %v180
  %v186 = vsel %vm185, %v180, %v184
  %v187 = vmul.f32 %v150, %v186
  %v188 = vmul.f32 %v179, %v186
  %v189 = vmul.f32 %v187, %v187
  %v190 = vsub.f32 %v188, %v189
  %v191 = vmax.f32 %v190, 0.0
  %v192 = vadd.f32 %v191, 1e-05
  %v193 = vrsqrt.pop %v192
  %v194 = vmul.f32 %v193, %v192
  %v195 = vmul.f32 %v194, %v193
  %v196 = vmul.f32 0.5, %v195
  %v197 = vsub.f32 1.5, %v196
  %v198 = vmul.f32 %v193, %v197
  %vm199 = vweird.f32 %v192
  %vm200 = vweird.f32 %v193
  %vm201 = vmor %vm199, %vm200
  %v202 = vsel %vm201, %v193, %v198
  %v203 = vmul.f32 %v128, %v202
  %v204 = vmul.f32 %v187, %v203
  %v205 = vsub.f32 %v129, %v204
  %v207 = vperm.slane %v203, 0
  %v209 = vmul.f32 %v120, %v207
  %v210 = vmul.f32 %v121, %v207
  %v211 = vmul.f32 %v122, %v207
  %v212 = vmul.f32 %v123, %v207
  %v213 = vmul.f32 %v124, %v207
  %v214 = vmul.f32 %v125, %v207
  %v215 = vmul.f32 %v126, %v207
  %v216 = vmul.f32 %v127, %v207
  %v218 = vperm.slane %v205, 0
  %v220 = vadd.f32 %v209, %v218
  %v221 = vadd.f32 %v210, %v218
  %v222 = vadd.f32 %v211, %v218
  %v223 = vadd.f32 %v212, %v218
  %v224 = vadd.f32 %v213, %v218
  %v225 = vadd.f32 %v214, %v218
  %v226 = vadd.f32 %v215, %v218
  %v227 = vadd.f32 %v216, %v218
  %v228 = vld [vmem:[%s5] sm:$0xff]
  %v229 = vld [vmem:[%s5 + $0x8] sm:$0xff]
  %v230 = vld [vmem:[%s5 + $0x10] sm:$0xff]
  %v231 = vld [vmem:[%s5 + $0x18] sm:$0xff]
  %v232 = vld [vmem:[%s6] sm:$0x1]
  %v234 = vperm.slane %v232, 0
  %v237 = vsel %vm54, %v220, 0
  %v240 = vsel %vm54, %v221, 0
  %v243 = vsel %vm54, %v222, 0
  %v246 = vsel %vm54, %v223, 0
  %v249 = vsel %vm54, %v224, 0
  %v252 = vsel %vm54, %v225, 0
  %v255 = vsel %vm54, %v226, 0
  %v258 = vsel %vm54, %v227, 0
  %260 = vmatpush.msra.mxu0 0.0
  %261 = vmatpush.msra.mxu0 0.0
  %262 = vmatpush.msra.mxu0 0.0
  %263 = vmatpush.msra.mxu0 0.0
  %264 = vmatpush.msra.mxu0 0.0
  %265 = vmatpush.msra.mxu0 0.0
  %266 = vmatpush.msra.mxu0 0.0
  %267 = vmatpush.msra.mxu0 0.0
  %268 = vmatpush.msra.mxu0 0.0
  %269 = vmatpush.msra.mxu0 0.0
  %270 = vmatpush.msra.mxu0 0.0
  %271 = vmatpush.msra.mxu0 0.0
  %272 = vmatpush.msra.mxu0 %v231
  %273 = vmatpush.msra.mxu0 %v230
  %274 = vmatpush.msra.mxu0 %v229
  %275 = vmatpush.msra.mxu0 %v228
  %276 = vmatmul.f32.gmra.mxu0 %v237
  %v277 = vpop.f32.mrf.mxu0
  %v278 = vadd.f32 %v234, %v277
  %279 = vmatmul.f32.gmra.mxu0 %v240
  %v280 = vpop.f32.mrf.mxu0
  %v281 = vadd.f32 %v234, %v280
  %282 = vmatmul.f32.gmra.mxu0 %v243
  %v283 = vpop.f32.mrf.mxu0
  %v284 = vadd.f32 %v234, %v283
  %285 = vmatmul.f32.gmra.mxu0 %v246
  %v286 = vpop.f32.mrf.mxu0
  %v287 = vadd.f32 %v234, %v286
  %288 = vmatmul.f32.gmra.mxu0 %v249
  %v289 = vpop.f32.mrf.mxu0
  %v290 = vadd.f32 %v234, %v289
  %291 = vmatmul.f32.gmra.mxu0 %v252
  %v292 = vpop.f32.mrf.mxu0
  %v293 = vadd.f32 %v234, %v292
  %294 = vmatmul.f32.gmra.mxu0 %v255
  %v295 = vpop.f32.mrf.mxu0
  %v296 = vadd.f32 %v234, %v295
  %297 = vmatmul.f32.gmra.mxu0 %v258
  %v298 = vpop.f32.mrf.mxu0
  %v299 = vadd.f32 %v234, %v298
  %300 = vdwg.mxu0
  %v301 = vmax.f32 %v278, 0.0
  %v302 = vmax.f32 %v281, 0.0
  %v303 = vmax.f32 %v284, 0.0
  %v304 = vmax.f32 %v287, 0.0
  %v305 = vmax.f32 %v290, 0.0
  %v306 = vmax.f32 %v293, 0.0
  %v307 = vmax.f32 %v296, 0.0
  %v308 = vmax.f32 %v299, 0.0
  %v309 = vld [vmem:[%s7] sm:$0x1]
  %v310 = vld [vmem:[%s8] sm:$0x1]
  %v311 = vsel %vm54, %v301, 0.0
  %v312 = vsel %vm54, %v302, 0.0
  %v313 = vadd.f32 %v311, %v312
  %v314 = vsel %vm54, %v303, 0.0
  %v315 = vadd.f32 %v313, %v314
  %v316 = vsel %vm54, %v304, 0.0
  %v317 = vadd.f32 %v315, %v316
  %v318 = vsel %vm54, %v305, 0.0
  %v319 = vadd.f32 %v317, %v318
  %v320 = vsel %vm54, %v306, 0.0
  %v321 = vadd.f32 %v319, %v320
  %v322 = vsel %vm54, %v307, 0.0
  %v323 = vadd.f32 %v321, %v322
  %v324 = vsel %vm54, %v308, 0.0
  %v325 = vadd.f32 %v323, %v324
  %v326 = vrot.slane %v325, 4
  %v327 = vadd.f32 %v325, %v326
  %v328 = vrot.slane %v327, 2
  %v329 = vadd.f32 %v327, %v328
  %v330 = vrot.slane %v329, 1
  %v331 = vadd.f32 %v329, %v330
  %v332 = vmul.f32 %v301, %v301
  %v333 = vmul.f32 %v302, %v302
  %v334 = vmul.f32 %v303, %v303
  %v335 = vmul.f32 %v304, %v304
  %v336 = vmul.f32 %v305, %v305
  %v337 = vmul.f32 %v306, %v306
  %v338 = vmul.f32 %v307, %v307
  %v339 = vmul.f32 %v308, %v308
  %v340 = vsel %vm54, %v332, 0.0
  %v341 = vsel %vm54, %v333, 0.0
  %v342 = vadd.f32 %v340, %v341
  %v343 = vsel %vm54, %v334, 0.0
  %v344 = vadd.f32 %v342, %v343
  %v345 = vsel %vm54, %v335, 0.0
  %v346 = vadd.f32 %v344, %v345
  %v347 = vsel %vm54, %v336, 0.0
  %v348 = vadd.f32 %v346, %v347
  %v349 = vsel %vm54, %v337, 0.0
  %v350 = vadd.f32 %v348, %v349
  %v351 = vsel %vm54, %v338, 0.0
  %v352 = vadd.f32 %v350, %v351
  %v353 = vsel %vm54, %v339, 0.0
  %v354 = vadd.f32 %v352, %v353
  %v355 = vrot.slane %v354, 4
  %v356 = vadd.f32 %v354, %v355
  %v357 = vrot.slane %v356, 2
  %v358 = vadd.f32 %v356, %v357
  %v359 = vrot.slane %v358, 1
  %v360 = vadd.f32 %v358, %v359
  %v361 = vmul.f32 %v331, %v186
  %v362 = vmul.f32 %v360, %v186
  %v363 = vmul.f32 %v361, %v361
  %v364 = vsub.f32 %v362, %v363
  %v365 = vmax.f32 %v364, 0.0
  %v366 = vadd.f32 %v365, 1e-05
  %v367 = vrsqrt.pop %v366
  %v368 = vmul.f32 %v367, %v366
  %v369 = vmul.f32 %v368, %v367
  %v370 = vmul.f32 0.5, %v369
  %v371 = vsub.f32 1.5, %v370
  %v372 = vmul.f32 %v367, %v371
  %vm373 = vweird.f32 %v366
  %vm374 = vweird.f32 %v367
  %vm375 = vmor %vm373, %vm374
  %v376 = vsel %vm375, %v367, %v372
  %v377 = vmul.f32 %v309, %v376
  %v378 = vmul.f32 %v361, %v377
  %v379 = vsub.f32 %v310, %v378
  %v381 = vperm.slane %v377, 0
  %v383 = vmul.f32 %v301, %v381
  %v384 = vmul.f32 %v302, %v381
  %v385 = vmul.f32 %v303, %v381
  %v386 = vmul.f32 %v304, %v381
  %v387 = vmul.f32 %v305, %v381
  %v388 = vmul.f32 %v306, %v381
  %v389 = vmul.f32 %v307, %v381
  %v390 = vmul.f32 %v308, %v381
  %v392 = vperm.slane %v379, 0
  %v394 = vadd.f32 %v383, %v392
  %v395 = vadd.f32 %v384, %v392
  %v396 = vadd.f32 %v385, %v392
  %v397 = vadd.f32 %v386, %v392
  %v398 = vadd.f32 %v387, %v392
  %v399 = vadd.f32 %v388, %v392
  %v400 = vadd.f32 %v389, %v392
  %v401 = vadd.f32 %v390, %v392
  %v402 = vld [vmem:[%s9] sm:$0xff]
  %v403 = vld [vmem:[%s9 + $0x8] sm:$0xff]
  %v404 = vld [vmem:[%s9 + $0x10] sm:$0xff]
  %v405 = vld [vmem:[%s9 + $0x18] sm:$0xff]
  %v406 = vld [vmem:[%s10] sm:$0x1]
  %v408 = vperm.slane %v406, 0
  %v411 = vsel %vm54, %v394, 0
  %v414 = vsel %vm54, %v395, 0
  %v417 = vsel %vm54, %v396, 0
  %v420 = vsel %vm54, %v397, 0
  %v423 = vsel %vm54, %v398, 0
  %v426 = vsel %vm54, %v399, 0
  %v429 = vsel %vm54, %v400, 0
  %v432 = vsel %vm54, %v401, 0
  %434 = vmatpush.msra.mxu0 0.0
  %435 = vmatpush.msra.mxu0 0.0
  %436 = vmatpush.msra.mxu0 0.0
  %437 = vmatpush.msra.mxu0 0.0
  %438 = vmatpush.msra.mxu0 0.0
  %439 = vmatpush.msra.mxu0 0.0
  %440 = vmatpush.msra.mxu0 0.0
  %441 = vmatpush.msra.mxu0 0.0
  %442 = vmatpush.msra.mxu0 0.0
  %443 = vmatpush.msra.mxu0 0.0
  %444 = vmatpush.msra.mxu0 0.0
  %445 = vmatpush.msra.mxu0 0.0
  %446 = vmatpush.msra.mxu0 %v405
  %447 = vmatpush.msra.mxu0 %v404
  %448 = vmatpush.msra.mxu0 %v403
  %449 = vmatpush.msra.mxu0 %v402
  %450 = vmatmul.f32.gmra.mxu0 %v411
  %v451 = vpop.f32.mrf.mxu0
  %v452 = vadd.f32 %v408, %v451
  %453 = vmatmul.f32.gmra.mxu0 %v414
  %v454 = vpop.f32.mrf.mxu0
  %v455 = vadd.f32 %v408, %v454
  %456 = vmatmul.f32.gmra.mxu0 %v417
  %v457 = vpop.f32.mrf.mxu0
  %v458 = vadd.f32 %v408, %v457
  %459 = vmatmul.f32.gmra.mxu0 %v420
  %v460 = vpop.f32.mrf.mxu0
  %v461 = vadd.f32 %v408, %v460
  %462 = vmatmul.f32.gmra.mxu0 %v423
  %v463 = vpop.f32.mrf.mxu0
  %v464 = vadd.f32 %v408, %v463
  %465 = vmatmul.f32.gmra.mxu0 %v426
  %v466 = vpop.f32.mrf.mxu0
  %v467 = vadd.f32 %v408, %v466
  %468 = vmatmul.f32.gmra.mxu0 %v429
  %v469 = vpop.f32.mrf.mxu0
  %v470 = vadd.f32 %v408, %v469
  %471 = vmatmul.f32.gmra.mxu0 %v432
  %v472 = vpop.f32.mrf.mxu0
  %v473 = vadd.f32 %v408, %v472
  %474 = vdwg.mxu0
  %vm475 = vcmask 64512
  %476 = vst.msk [vmem:[%s11] sm:$0xff] %vm475, %v452
  %477 = vst.msk [vmem:[%s11 + $0x8] sm:$0xff] %vm475, %v455
  %478 = vst.msk [vmem:[%s11 + $0x10] sm:$0xff] %vm475, %v458
  %479 = vst.msk [vmem:[%s11 + $0x18] sm:$0xff] %vm475, %v461
  %480 = vst.msk [vmem:[%s11 + $0x20] sm:$0xff] %vm475, %v464
  %481 = vst.msk [vmem:[%s11 + $0x28] sm:$0xff] %vm475, %v467
  %482 = vst.msk [vmem:[%s11 + $0x30] sm:$0xff] %vm475, %v470
  %483 = vst.msk [vmem:[%s11 + $0x38] sm:$0xff] %vm475, %v473
  // Predicated region
  $region46: #{tpu_custom_call.1} parent=0 // pred_check
    _
  $region47: #{tpu_custom_call.1} parent=0 // pred_check_branch
    %485 = sbr.rel (0) target = $region49
  $region48: #{tpu_custom_call.1} parent=0 // pred_region
    _
  $region49: #{tpu_custom_call.1} parent=0 // pred_fallthru
    _
  // Predicated region
  $region50: #{tpu_custom_call.1} parent=0 // pred_check
    _
  $region51: #{tpu_custom_call.1} parent=0 // pred_check_branch
    %487 = sbr.rel (0) target = $region53
  $region52: #{tpu_custom_call.1} parent=0 // pred_region
    _
  $region53: #{tpu_custom_call.1} parent=0 // pred_fallthru
    _

</llo_original>
